<compile_context>
chip_gen: v6e
topology: v6e:2x2x1
jax: 0.10.0
libtpu: 0.0.40
codegen_flags: <defaults>
</compile_context>

<pallas_src>
import math

import jax
import jax.numpy as jnp
from jax.experimental import pallas as pl
from jax.experimental.pallas import tpu as pltpu


def _cdiv(a, b):
    return (a + b - 1) // b


def _round_up(x, m):
    return ((x + m - 1) // m) * m


# --------------------------------------------------------------------------
# Hardware-aware budgets
# --------------------------------------------------------------------------

def _tpu_budget():
    """Return (vmem_limit_bytes, num_tensorcores) with safe fallbacks.

    Falls back to the most conservative values (v7x: 64 MiB VMEM, 2 TCs) if
    the hardware query is unavailable.
    """
    physical_vmem = 64 << 20
    num_tc = 2
    try:
        info = pltpu.get_tpu_info()
        physical_vmem = int(getattr(info, "vmem_capacity_bytes", physical_vmem))
        for attr in ("num_tensorcores", "tensor_cores_per_chip",
                     "num_cores", "cores_per_chip"):
            val = getattr(info, attr, None)
            if val:
                num_tc = int(val)
                break
    except Exception:
        pass
    # Leave ~25% headroom below physical capacity:
    #   v7x -> 48 MiB scoped limit, v5e/v6e (128 MiB) -> 96 MiB.
    vmem_limit = (physical_vmem * 3) // 4
    return int(vmem_limit), int(num_tc)


def _choose_tile_m(M, pack, base, num_tc, budget_rows):
    """Largest pack-aligned M tile that fits the VMEM budget.

    On multi-TensorCore chips also targets >=2 grid steps per core (so the
    BlockSpec double-buffering overlaps DMA with compute); on single-core
    chips no split is forced.
    """
    cap = max(pack, (max(int(budget_rows), pack) // pack) * pack)
    tile = min(base, cap, _round_up(M, pack))
    if num_tc >= 2 and M > pack:
        target = max(pack, _round_up(_cdiv(M, 2 * num_tc), pack))
        tile = min(tile, target)
    return max(pack, int(tile))


# --------------------------------------------------------------------------
# Kernels — resident-weight path (weights/bias VMEM-resident across the grid)
# --------------------------------------------------------------------------

def _linear_store(x_ref, w_ref, b_ref, o_ref):
    acc = jnp.dot(x_ref[...], w_ref[...], preferred_element_type=jnp.float32)
    o_ref[...] = (acc + b_ref[...]).astype(o_ref.dtype)


def _pairwise_kernel(l_ref, r_ref, wl_ref, bl_ref, wr_ref, br_ref,
                     ol_ref, or_ref):
    """out_l = lefts @ Wl + bl ; out_r = rights @ Wr + br (separate weights)."""
    _linear_store(l_ref, wl_ref, bl_ref, ol_ref)
    _linear_store(r_ref, wr_ref, br_ref, or_ref)


def _pairwise_shared_kernel(l_ref, r_ref, w_ref, b_ref, ol_ref, or_ref):
    """Shared-weight variant (PairwiseProjection with right=None)."""
    _linear_store(l_ref, w_ref, b_ref, ol_ref)
    _linear_store(r_ref, w_ref, b_ref, or_ref)


# --------------------------------------------------------------------------
# Kernels — K-tiled path (f32 accumulators, weights streamed per K block)
# --------------------------------------------------------------------------

def _pairwise_kernel_ktiled(l_ref, r_ref, wl_ref, bl_ref, wr_ref, br_ref,
                            ol_ref, or_ref, accl_ref, accr_ref):
    k = pl.program_id(1)

    @pl.when(k == 0)
    def _():
        accl_ref[...] = jnp.zeros_like(accl_ref)
        accr_ref[...] = jnp.zeros_like(accr_ref)

    accl_ref[...] += jnp.dot(l_ref[...], wl_ref[...],
                             preferred_element_type=jnp.float32)
    accr_ref[...] += jnp.dot(r_ref[...], wr_ref[...],
                             preferred_element_type=jnp.float32)

    @pl.when(k == pl.num_programs(1) - 1)
    def _():
        ol_ref[...] = (accl_ref[...] + bl_ref[...]).astype(ol_ref.dtype)
        or_ref[...] = (accr_ref[...] + br_ref[...]).astype(or_ref.dtype)


def _pairwise_shared_kernel_ktiled(l_ref, r_ref, w_ref, b_ref,
                                   ol_ref, or_ref, accl_ref, accr_ref):
    k = pl.program_id(1)

    @pl.when(k == 0)
    def _():
        accl_ref[...] = jnp.zeros_like(accl_ref)
        accr_ref[...] = jnp.zeros_like(accr_ref)

    accl_ref[...] += jnp.dot(l_ref[...], w_ref[...],
                             preferred_element_type=jnp.float32)
    accr_ref[...] += jnp.dot(r_ref[...], w_ref[...],
                             preferred_element_type=jnp.float32)

    @pl.when(k == pl.num_programs(1) - 1)
    def _():
        ol_ref[...] = (accl_ref[...] + b_ref[...]).astype(ol_ref.dtype)
        or_ref[...] = (accr_ref[...] + b_ref[...]).astype(or_ref.dtype)


# --------------------------------------------------------------------------
# Wrapper
# --------------------------------------------------------------------------

def pairwise_projection(lefts, rights, w_left, b_left,
                        w_right=None, b_right=None, *, k_tiling=None):
    """Apply the left projection to `lefts` and the right one to `rights`.

    lefts, rights : (*, in_features)
    w_*           : (in_features, out_features)  (torch Linear weight, transposed)
    b_*           : (out_features,)
    w_right/b_right=None mirrors PairwiseProjection(right=None): the left
    projection is applied to both sides.
    k_tiling      : None=auto (based on VMEM budget), True/False to force.

    Returns (out_left, out_right), each (*, out_features).
    """
    if (w_right is None) != (b_right is None):
        raise ValueError("w_right and b_right must both be given or both None")
    shared = w_right is None

    K = lefts.shape[-1]
    if rights.shape[-1] != K:
        raise ValueError("lefts/rights must have the same feature dimension")
    if lefts.shape[:-1] != rights.shape[:-1]:
        raise ValueError("lefts/rights must have the same leading shape")
    if w_left.shape[0] != K:
        raise ValueError(f"expected {w_left.shape[0]} input features, got {K}")
    N = w_left.shape[1]
    if b_left.shape != (N,):
        raise ValueError("b_left shape mismatch")
    if not shared:
        if w_right.shape != w_left.shape or b_right.shape != b_left.shape:
            raise ValueError("left/right projections must have the same shape")

    lead = lefts.shape[:-1]
    M = int(math.prod(lead)) if lead else 1
    out_dtype_l = lefts.dtype
    out_dtype_r = rights.dtype

    if M == 0:  # empty leading dims: nothing to compute
        return (jnp.zeros((*lead, N), out_dtype_l),
                jnp.zeros((*lead, N), out_dtype_r))

    l2d = lefts.reshape(M, K)
    r2d = rights.reshape(M, K)

    wl = w_left
    bl = b_left.reshape(1, N).astype(jnp.float32)
    if shared:
        wr, br = None, None
        n_w = 1
    else:
        wr = w_right
        br = b_right.reshape(1, N).astype(jnp.float32)
        n_w = 2

    in_bytes = jnp.dtype(l2d.dtype).itemsize
    w_bytes = jnp.dtype(wl.dtype).itemsize
    out_bytes = in_bytes
    pack = 16 if in_bytes == 2 else 8            # bf16 packs 16 rows / vreg
    base_tile = 1024 if in_bytes == 2 else 512   # >=512-row tiles ~ HBM roofline

    vmem_limit, num_tc = _tpu_budget()
    headroom = 2 << 20

    # ---- path selection: resident (K, N) weights vs K-tiled accumulator ----
    resident_fixed = n_w * (K * N * w_bytes + N * 4)     # single-buffered
    resident_per_row = 4 * K * in_bytes + 4 * N * out_bytes  # 2 streams x 2 bufs
    resident_rows = (vmem_limit - headroom - resident_fixed) // resident_per_row
    if k_tiling is None:
        use_k_tiling = resident_rows < 8 * pack
    else:
        use_k_tiling = bool(k_tiling)

    if not use_k_tiling:
        # ---------------- resident-weight path ----------------
        tile_m = _choose_tile_m(M, pack, base_tile, num_tc, resident_rows)
        grid = (_cdiv(M, tile_m),)
        dims = ("parallel",)
        w_stream_bytes = n_w * (K * N * w_bytes + N * 4)

        def build(single_buf_resident):
            wb = ({"pipeline_mode": pl.Buffered(1)} if single_buf_resident else {})
            act = pl.BlockSpec((tile_m, K), lambda i: (i, 0))
            w_s = pl.BlockSpec((K, N), lambda i: (0, 0), **wb)
            b_s = pl.BlockSpec((1, N), lambda i: (0, 0), **wb)
            out = pl.BlockSpec((tile_m, N), lambda i: (i, 0))
            if shared:
                return (_pairwise_shared_kernel, [act, act, w_s, b_s],
                        [out, out], (l2d, r2d, wl, bl), [])
            return (_pairwise_kernel, [act, act, w_s, b_s, w_s, b_s],
                    [out, out], (l2d, r2d, wl, bl, wr, br), [])
    else:
        # ---------------- K-tiled accumulator path ----------------
        Kp = _round_up(K, 128)
        tile_k = 128
        for cand in (512, 384, 256, 128):
            if cand <= Kp and Kp % cand == 0:
                tile_k = cand
                break
        if Kp != K:
            # Zero-pad the contraction axis so every K block is fully
            # in-bounds; padded activation columns contribute exactly zero.
            l2d = jnp.pad(l2d, ((0, 0), (0, Kp - K)))
            r2d = jnp.pad(r2d, ((0, 0), (0, Kp - K)))
            wl = jnp.pad(wl, ((0, Kp - K), (0, 0)))
            if not shared:
                wr = jnp.pad(wr, ((0, Kp - K), (0, 0)))

        k_fixed = n_w * (2 * tile_k * N * w_bytes + N * 4)      # W dbl-buffered
        k_per_row = (4 * tile_k * in_bytes            # 2 act streams x 2 bufs
                     + 4 * N * out_bytes              # 2 out streams x 2 bufs
                     + 2 * N * 4)                     # 2 f32 accumulators
        k_rows = (vmem_limit - headroom - k_fixed) // k_per_row
        tile_m = _choose_tile_m(M, pack, base_tile, num_tc, k_rows)
        grid_m = _cdiv(M, tile_m)
        grid = (grid_m, Kp // tile_k)
        dims = ("parallel", "arbitrary")
        w_stream_bytes = grid_m * n_w * Kp * N * w_bytes + n_w * N * 4

        def build(single_buf_resident):
            wb = ({"pipeline_mode": pl.Buffered(1)} if single_buf_resident else {})
            act = pl.BlockSpec((tile_m, tile_k), lambda i, k: (i, k))
            w_s = pl.BlockSpec((tile_k, N), lambda i, k: (k, 0))
            b_s = pl.BlockSpec((1, N), lambda i, k: (0, 0), **wb)
            out = pl.BlockSpec((tile_m, N), lambda i, k: (i, 0))
            scratch = [pltpu.VMEM((tile_m, N), jnp.float32),
                       pltpu.VMEM((tile_m, N), jnp.float32)]
            if shared:
                return (_pairwise_shared_kernel_ktiled, [act, act, w_s, b_s],
                        [out, out], (l2d, r2d, wl, bl), scratch)
            return (_pairwise_kernel_ktiled, [act, act, w_s, b_s, w_s, b_s],
                    [out, out], (l2d, r2d, wl, bl, wr, br), scratch)

    # Scheduler hint around the custom call.
    cost = pl.CostEstimate(
        flops=2 * 2 * M * K * N + 2 * M * N,
        transcendentals=0,
        bytes_accessed=int(2 * M * K * in_bytes + w_stream_bytes
                           + 2 * M * N * out_bytes),
    )

    def run(single_buf_resident):
        kernel, in_specs, out_specs, args, scratch = build(single_buf_resident)
        return pl.pallas_call(
            kernel,
            out_shape=(jax.ShapeDtypeStruct((M, N), out_dtype_l),
                       jax.ShapeDtypeStruct((M, N), out_dtype_r)),
            grid_spec=pltpu.PrefetchScalarGridSpec(
                num_scalar_prefetch=0,
                grid=grid,
                in_specs=in_specs,
                out_specs=out_specs,
                scratch_shapes=scratch,
            ),
            compiler_params=pltpu.CompilerParams(
                dimension_semantics=dims,
                vmem_limit_bytes=int(vmem_limit)),
            cost_estimate=cost,
        )(*args)

    try:
        # Constant-index weight/bias blocks single-buffered (pl.Buffered(1)).
        out_l2d, out_r2d = run(True)
    except Exception:
        # Fallback: plain (double-buffered) specs if Buffered(1) is rejected
        # by this JAX/Mosaic build. Costs extra VMEM only for the weights.
        out_l2d, out_r2d = run(False)

    return out_l2d.reshape(*lead, N), out_r2d.reshape(*lead, N)


def make_projection_params(key, in_features, out_features):
    """Deterministic stand-in for nn.Linear(in_features, out_features) init.

    Returns (W_t, b) with W_t of shape (in_features, out_features) = W.T.
    """
    kw, kb = jax.random.split(key)
    bound = 1.0 / math.sqrt(in_features)
    w = jax.random.uniform(kw, (out_features, in_features), jnp.float32,
                           -bound, bound)
    b = jax.random.uniform(kb, (out_features,), jnp.float32, -bound, bound)
    return w.T, b


if __name__ == "__main__":
    key = jax.random.PRNGKey(0)
    (k_l, k_r, k_x, k_y, k_x2, k_y2,
     k_x3, k_y3, k_l3, k_r3) = jax.random.split(key, 10)

    in_features, out_features = 32, 16
    batch, seq = 2, 8

    # left and right Projections (same (in, out) shape, as required).
    wl, bl = make_projection_params(k_l, in_features, out_features)
    wr, br = make_projection_params(k_r, in_features, out_features)

    lefts = jax.random.normal(k_x, (batch, seq, in_features), jnp.float32)
    rights = jax.random.normal(k_y, (batch, seq, in_features), jnp.float32)

    # (1) distinct left/right projections.
    out_l, out_r = pairwise_projection(lefts, rights, wl, bl, wr, br)
    jax.block_until_ready((out_l, out_r))
    ref_l = lefts @ wl + bl
    ref_r = rights @ wr + br
    assert out_l.shape == (batch, seq, out_features)
    assert out_r.shape == (batch, seq, out_features)
    assert jnp.allclose(out_l, ref_l, atol=1e-5, rtol=1e-5)
    assert jnp.allclose(out_r, ref_r, atol=1e-5, rtol=1e-5)

    # (2) right=None default: same projection applied to both sides.
    out_l2, out_r2 = pairwise_projection(lefts, rights, wl, bl)
    jax.block_until_ready((out_l2, out_r2))
    assert jnp.allclose(out_l2, ref_l, atol=1e-5, rtol=1e-5)
    assert jnp.allclose(out_r2, rights @ wl + bl, atol=1e-5, rtol=1e-5)

    # (3) ragged M (product of leading dims not a multiple of the tile):
    #     last M block handled by Pallas block masking, no wrapper pad.
    lefts3 = jax.random.normal(k_x2, (3, 5, in_features), jnp.float32)
    rights3 = jax.random.normal(k_y2, (3, 5, in_features), jnp.float32)
    out_l3, out_r3 = pairwise_projection(lefts3, rights3, wl, bl, wr, br)
    jax.block_until_ready((out_l3, out_r3))
    assert jnp.allclose(out_l3, lefts3 @ wl + bl, atol=1e-5, rtol=1e-5)
    assert jnp.allclose(out_r3, rights3 @ wr + br, atol=1e-5, rtol=1e-5)

    # (4) forced K-tiled accumulator path: K=650 (not a multiple of 128)
    #     exercises the zero-padded contraction axis and multi-step
    #     pl.when init/accumulate/finalize.
    K4, N4, M4 = 650, 128, 48
    wl4, bl4 = make_projection_params(k_l3, K4, N4)
    wr4, br4 = make_projection_params(k_r3, K4, N4)
    lefts4 = jax.random.normal(k_x3, (M4, K4), jnp.float32)
    rights4 = jax.random.normal(k_y3, (M4, K4), jnp.float32)
    out_l4, out_r4 = pairwise_projection(lefts4, rights4, wl4, bl4, wr4, br4,
                                         k_tiling=True)
    jax.block_until_ready((out_l4, out_r4))
    assert jnp.allclose(out_l4, lefts4 @ wl4 + bl4, atol=1e-3, rtol=1e-3)
    assert jnp.allclose(out_r4, rights4 @ wr4 + br4, atol=1e-3, rtol=1e-3)

    # (5) K-tiled + shared weights.
    out_l5, out_r5 = pairwise_projection(lefts4, rights4, wl4, bl4,
                                         k_tiling=True)
    jax.block_until_ready((out_l5, out_r5))
    assert jnp.allclose(out_l5, lefts4 @ wl4 + bl4, atol=1e-3, rtol=1e-3)
    assert jnp.allclose(out_r5, rights4 @ wl4 + bl4, atol=1e-3, rtol=1e-3)

    # (6) empty leading dimension guard.
    le = jnp.zeros((0, in_features), jnp.float32)
    re_ = jnp.zeros((0, in_features), jnp.float32)
    oe_l, oe_r = pairwise_projection(le, re_, wl, bl)
    assert oe_l.shape == (0, out_features) and oe_r.shape == (0, out_features)

    print("KERNEL_OK")
</pallas_src>

<mosaic_0001>
module attributes {stable_mosaic.version = 11 : i64} {
  func.func @_pairwise_kernel(%arg0: i32, %arg1: memref<8x32xf32, #tpu.memory_space<vmem>>, %arg2: memref<8x32xf32, #tpu.memory_space<vmem>>, %arg3: memref<32x16xf32, #tpu.memory_space<vmem>>, %arg4: memref<1x16xf32, #tpu.memory_space<vmem>>, %arg5: memref<32x16xf32, #tpu.memory_space<vmem>>, %arg6: memref<1x16xf32, #tpu.memory_space<vmem>>, %arg7: memref<8x16xf32, #tpu.memory_space<vmem>>, %arg8: memref<8x16xf32, #tpu.memory_space<vmem>>) attributes {dimension_semantics = [#tpu.dimension_semantics<parallel>], iteration_bounds = array<i64: 2>, scalar_prefetch = 0 : i64, scratch_operands = 0 : i64, tpu.core_type = #tpu.core_type<tc>, window_params = [{transform_indices = @transform_0, window_bounds = array<i64: 8, 32>}, {transform_indices = @transform_1, window_bounds = array<i64: 8, 32>}, {pipeline_mode = #tpu.pipeline_mode<synchronous>, transform_indices = @transform_2, window_bounds = array<i64: 32, 16>}, {pipeline_mode = #tpu.pipeline_mode<synchronous>, transform_indices = @transform_3, window_bounds = array<i64: 1, 16>}, {pipeline_mode = #tpu.pipeline_mode<synchronous>, transform_indices = @transform_4, window_bounds = array<i64: 32, 16>}, {pipeline_mode = #tpu.pipeline_mode<synchronous>, transform_indices = @transform_5, window_bounds = array<i64: 1, 16>}, {transform_indices = @transform_6, window_bounds = array<i64: 8, 16>}, {transform_indices = @transform_7, window_bounds = array<i64: 8, 16>}]} {
    %c0 = arith.constant 0 : index
    %c0_0 = arith.constant 0 : index
    %0 = vector.load %arg1[%c0, %c0_0] : memref<8x32xf32, #tpu.memory_space<vmem>>, vector<8x32xf32>
    %c0_1 = arith.constant 0 : index
    %c0_2 = arith.constant 0 : index
    %1 = vector.load %arg3[%c0_1, %c0_2] : memref<32x16xf32, #tpu.memory_space<vmem>>, vector<32x16xf32>
    %cst = arith.constant dense<0.000000e+00> : vector<8x16xf32>
    %2 = tpu.matmul %0, %1, %cst {dimension_numbers = #tpu.dot_dimension_numbers<[1], [0], [0], [1], [0, 0, 1, 1], [], []>} : vector<8x32xf32>, vector<32x16xf32>, vector<8x16xf32> -> vector<8x16xf32>
    %c0_3 = arith.constant 0 : index
    %c0_4 = arith.constant 0 : index
    %3 = vector.load %arg4[%c0_3, %c0_4] : memref<1x16xf32, #tpu.memory_space<vmem>>, vector<1x16xf32>
    %4 = vector.broadcast %3 : vector<1x16xf32> to vector<8x16xf32>
    %5 = arith.addf %2, %4 : vector<8x16xf32>
    %c0_5 = arith.constant 0 : index
    %c0_6 = arith.constant 0 : index
    %6 = vector.load %arg7[%c0_5, %c0_6] : memref<8x16xf32, #tpu.memory_space<vmem>>, vector<8x16xf32>
    tpu.vector_store %arg7[%c0_5, %c0_6], %5 {strides = array<i32>} : memref<8x16xf32, #tpu.memory_space<vmem>>, vector<8x16xf32>,
    %c0_7 = arith.constant 0 : index
    %c0_8 = arith.constant 0 : index
    %7 = vector.load %arg2[%c0_7, %c0_8] : memref<8x32xf32, #tpu.memory_space<vmem>>, vector<8x32xf32>
    %c0_9 = arith.constant 0 : index
    %c0_10 = arith.constant 0 : index
    %8 = vector.load %arg5[%c0_9, %c0_10] : memref<32x16xf32, #tpu.memory_space<vmem>>, vector<32x16xf32>
    %cst_11 = arith.constant dense<0.000000e+00> : vector<8x16xf32>
    %9 = tpu.matmul %7, %8, %cst_11 {dimension_numbers = #tpu.dot_dimension_numbers<[1], [0], [0], [1], [0, 0, 1, 1], [], []>} : vector<8x32xf32>, vector<32x16xf32>, vector<8x16xf32> -> vector<8x16xf32>
    %c0_12 = arith.constant 0 : index
    %c0_13 = arith.constant 0 : index
    %10 = vector.load %arg6[%c0_12, %c0_13] : memref<1x16xf32, #tpu.memory_space<vmem>>, vector<1x16xf32>
    %11 = vector.broadcast %10 : vector<1x16xf32> to vector<8x16xf32>
    %12 = arith.addf %9, %11 : vector<8x16xf32>
    %c0_14 = arith.constant 0 : index
    %c0_15 = arith.constant 0 : index
    %13 = vector.load %arg8[%c0_14, %c0_15] : memref<8x16xf32, #tpu.memory_space<vmem>>, vector<8x16xf32>
    tpu.vector_store %arg8[%c0_14, %c0_15], %12 {strides = array<i32>} : memref<8x16xf32, #tpu.memory_space<vmem>>, vector<8x16xf32>,
    return
  }
  func.func @transform_0(%arg0: i32) -> (i32, i32) {
    %c0_i32 = arith.constant 0 : i32
    %c0_i32_0 = arith.constant 0 : i32
    return %arg0, %c0_i32 : i32, i32
  }
  func.func @transform_1(%arg0: i32) -> (i32, i32) {
    %c0_i32 = arith.constant 0 : i32
    %c0_i32_0 = arith.constant 0 : i32
    return %arg0, %c0_i32 : i32, i32
  }
  func.func @transform_2(%arg0: i32) -> (i32, i32) {
    %c0_i32 = arith.constant 0 : i32
    %c0_i32_0 = arith.constant 0 : i32
    %c0_i32_1 = arith.constant 0 : i32
    return %c0_i32, %c0_i32_0 : i32, i32
  }
  func.func @transform_3(%arg0: i32) -> (i32, i32) {
    %c0_i32 = arith.constant 0 : i32
    %c0_i32_0 = arith.constant 0 : i32
    %c0_i32_1 = arith.constant 0 : i32
    return %c0_i32, %c0_i32_0 : i32, i32
  }
  func.func @transform_4(%arg0: i32) -> (i32, i32) {
    %c0_i32 = arith.constant 0 : i32
    %c0_i32_0 = arith.constant 0 : i32
    %c0_i32_1 = arith.constant 0 : i32
    return %c0_i32, %c0_i32_0 : i32, i32
  }
  func.func @transform_5(%arg0: i32) -> (i32, i32) {
    %c0_i32 = arith.constant 0 : i32
    %c0_i32_0 = arith.constant 0 : i32
    %c0_i32_1 = arith.constant 0 : i32
    return %c0_i32, %c0_i32_0 : i32, i32
  }
  func.func @transform_6(%arg0: i32) -> (i32, i32) {
    %c0_i32 = arith.constant 0 : i32
    %c0_i32_0 = arith.constant 0 : i32
    return %arg0, %c0_i32 : i32, i32
  }
  func.func @transform_7(%arg0: i32) -> (i32, i32) {
    %c0_i32 = arith.constant 0 : i32
    %c0_i32_0 = arith.constant 0 : i32
    return %arg0, %c0_i32 : i32, i32
  }
}

module attributes {stable_mosaic.version = 11 : i64} {
  func.func @_pairwise_kernel(%arg0: i32, %arg1: memref<8x32xf32, #tpu.memory_space<vmem>>, %arg2: memref<8x32xf32, #tpu.memory_space<vmem>>, %arg3: memref<32x16xf32, #tpu.memory_space<vmem>>, %arg4: memref<1x16xf32, #tpu.memory_space<vmem>>, %arg5: memref<32x16xf32, #tpu.memory_space<vmem>>, %arg6: memref<1x16xf32, #tpu.memory_space<vmem>>, %arg7: memref<8x16xf32, #tpu.memory_space<vmem>>, %arg8: memref<8x16xf32, #tpu.memory_space<vmem>>) attributes {dimension_semantics = [#tpu.dimension_semantics<parallel>], iteration_bounds = array<i64: 2>, scalar_prefetch = 0 : i64, scratch_operands = 0 : i64, tpu.core_type = #tpu.core_type<tc>, window_params = [{transform_indices = @transform_0, window_bounds = array<i64: 8, 32>}, {transform_indices = @transform_1, window_bounds = array<i64: 8, 32>}, {pipeline_mode = #tpu.pipeline_mode<synchronous>, transform_indices = @transform_2, window_bounds = array<i64: 32, 16>}, {pipeline_mode = #tpu.pipeline_mode<synchronous>, transform_indices = @transform_3, window_bounds = array<i64: 1, 16>}, {pipeline_mode = #tpu.pipeline_mode<synchronous>, transform_indices = @transform_4, window_bounds = array<i64: 32, 16>}, {pipeline_mode = #tpu.pipeline_mode<synchronous>, transform_indices = @transform_5, window_bounds = array<i64: 1, 16>}, {transform_indices = @transform_6, window_bounds = array<i64: 8, 16>}, {transform_indices = @transform_7, window_bounds = array<i64: 8, 16>}]} {
    %c0 = arith.constant 0 : index
    %c0_0 = arith.constant 0 : index
    %0 = vector.load %arg1[%c0, %c0_0] : memref<8x32xf32, #tpu.memory_space<vmem>>, vector<8x32xf32>
    %c0_1 = arith.constant 0 : index
    %c0_2 = arith.constant 0 : index
    %1 = vector.load %arg3[%c0_1, %c0_2] : memref<32x16xf32, #tpu.memory_space<vmem>>, vector<32x16xf32>
    %cst = arith.constant dense<0.000000e+00> : vector<8x16xf32>
    %2 = tpu.matmul %0, %1, %cst {dimension_numbers = #tpu.dot_dimension_numbers<[1], [0], [0], [1], [0, 0, 1, 1], [], []>} : vector<8x32xf32>, vector<32x16xf32>, vector<8x16xf32> -> vector<8x16xf32>
    %c0_3 = arith.constant 0 : index
    %c0_4 = arith.constant 0 : index
    %3 = vector.load %arg4[%c0_3, %c0_4] : memref<1x16xf32, #tpu.memory_space<vmem>>, vector<1x16xf32>
    %4 = vector.broadcast %3 : vector<1x16xf32> to vector<8x16xf32>
    %5 = arith.addf %2, %4 : vector<8x16xf32>
    %c0_5 = arith.constant 0 : index
    %c0_6 = arith.constant 0 : index
    %6 = vector.load %arg7[%c0_5, %c0_6] : memref<8x16xf32, #tpu.memory_space<vmem>>, vector<8x16xf32>
    tpu.vector_store %arg7[%c0_5, %c0_6], %5 {strides = array<i32>} : memref<8x16xf32, #tpu.memory_space<vmem>>, vector<8x16xf32>,
    %c0_7 = arith.constant 0 : index
    %c0_8 = arith.constant 0 : index
    %7 = vector.load %arg2[%c0_7, %c0_8] : memref<8x32xf32, #tpu.memory_space<vmem>>, vector<8x32xf32>
    %c0_9 = arith.constant 0 : index
    %c0_10 = arith.constant 0 : index
    %8 = vector.load %arg5[%c0_9, %c0_10] : memref<32x16xf32, #tpu.memory_space<vmem>>, vector<32x16xf32>
    %cst_11 = arith.constant dense<0.000000e+00> : vector<8x16xf32>
    %9 = tpu.matmul %7, %8, %cst_11 {dimension_numbers = #tpu.dot_dimension_numbers<[1], [0], [0], [1], [0, 0, 1, 1], [], []>} : vector<8x32xf32>, vector<32x16xf32>, vector<8x16xf32> -> vector<8x16xf32>
    %c0_12 = arith.constant 0 : index
    %c0_13 = arith.constant 0 : index
    %10 = vector.load %arg6[%c0_12, %c0_13] : memref<1x16xf32, #tpu.memory_space<vmem>>, vector<1x16xf32>
    %11 = vector.broadcast %10 : vector<1x16xf32> to vector<8x16xf32>
    %12 = arith.addf %9, %11 : vector<8x16xf32>
    %c0_14 = arith.constant 0 : index
    %c0_15 = arith.constant 0 : index
    %13 = vector.load %arg8[%c0_14, %c0_15] : memref<8x16xf32, #tpu.memory_space<vmem>>, vector<8x16xf32>
    tpu.vector_store %arg8[%c0_14, %c0_15], %12 {strides = array<i32>} : memref<8x16xf32, #tpu.memory_space<vmem>>, vector<8x16xf32>,
    return
  }
  func.func @transform_0(%arg0: i32) -> (i32, i32) {
    %c0_i32 = arith.constant 0 : i32
    %c0_i32_0 = arith.constant 0 : i32
    return %arg0, %c0_i32 : i32, i32
  }
  func.func @transform_1(%arg0: i32) -> (i32, i32) {
    %c0_i32 = arith.constant 0 : i32
    %c0_i32_0 = arith.constant 0 : i32
    return %arg0, %c0_i32 : i32, i32
  }
  func.func @transform_2(%arg0: i32) -> (i32, i32) {
    %c0_i32 = arith.constant 0 : i32
    %c0_i32_0 = arith.constant 0 : i32
    %c0_i32_1 = arith.constant 0 : i32
    return %c0_i32, %c0_i32_0 : i32, i32
  }
  func.func @transform_3(%arg0: i32) -> (i32, i32) {
    %c0_i32 = arith.constant 0 : i32
    %c0_i32_0 = arith.constant 0 : i32
    %c0_i32_1 = arith.constant 0 : i32
    return %c0_i32, %c0_i32_0 : i32, i32
  }
  func.func @transform_4(%arg0: i32) -> (i32, i32) {
    %c0_i32 = arith.constant 0 : i32
    %c0_i32_0 = arith.constant 0 : i32
    %c0_i32_1 = arith.constant 0 : i32
    return %c0_i32, %c0_i32_0 : i32, i32
  }
  func.func @transform_5(%arg0: i32) -> (i32, i32) {
    %c0_i32 = arith.constant 0 : i32
    %c0_i32_0 = arith.constant 0 : i32
    %c0_i32_1 = arith.constant 0 : i32
    return %c0_i32, %c0_i32_0 : i32, i32
  }
  func.func @transform_6(%arg0: i32) -> (i32, i32) {
    %c0_i32 = arith.constant 0 : i32
    %c0_i32_0 = arith.constant 0 : i32
    return %arg0, %c0_i32 : i32, i32
  }
  func.func @transform_7(%arg0: i32) -> (i32, i32) {
    %c0_i32 = arith.constant 0 : i32
    %c0_i32_0 = arith.constant 0 : i32
    return %arg0, %c0_i32 : i32, i32
  }
}

</mosaic_0001>

<llo_original>
// kernel: tpu_custom_call.1
$region0: #{tpu_custom_call.1}
  #allocation0 [shape = 'u32[]', space=smem, size = 0x4, offset = 0x4, fixed_abs, tag = 'smem constant byte address 0x4 - core index']
  #allocation1 [shape = 'u32[144,128]{1,0:T(1,128)}', space=vmem, size = 0x12000, scoped, tag = 'internal scratch']
  %s0 = inlined_call_operand.vmem [shape: f32[16,32], index: 0, kind: input, shape index: {}]
  %s1 = inlined_call_operand.vmem [shape: f32[16,32], index: 1, kind: input, shape index: {}]
  %s2 = inlined_call_operand.vmem [shape: f32[32,16], index: 2, kind: input, shape index: {}]
  %s3 = inlined_call_operand.vmem [shape: f32[1,16], index: 3, kind: input, shape index: {}]
  %s4 = inlined_call_operand.vmem [shape: f32[32,16], index: 4, kind: input, shape index: {}]
  %s5 = inlined_call_operand.vmem [shape: f32[1,16], index: 5, kind: input, shape index: {}]
  %s6 = inlined_call_operand.hbm [shape: f32[16,16], index: 6, kind: output, shape index: {0}]
  %s7 = inlined_call_operand.hbm [shape: f32[16,16], index: 7, kind: output, shape index: {1}]
  %8 = xla_tuple %s6, %s7
  %s9 = sld [smem:[#allocation0]]
  $region65: #{tpu_custom_call.1} parent=0
    _
  %s11 = ssub.s32 1, %s9
  %s12 = scalar_select 0, %s11, %s9
  $region1: #{tpu_custom_call.1} parent=0
    #allocation2 [shape = 'u8[8192]{0}', space=vmem, size = 0x2000, scoped, tag = 'output window, operand 0']
    #allocation3 [shape = 's32[2]{0}', space=sflag, size = 0x8, scoped, tag = 'scoped memory for tpu_custom_call.1']
    #allocation4 [shape = 'u8[8192]{0}', space=vmem, size = 0x2000, scoped, tag = 'output window, operand 1']
    #allocation5 [shape = 's32[2]{0}', space=sflag, size = 0x8, scoped, tag = 'scoped memory for tpu_custom_call.1']
    %13 = vsyncpa [#allocation3], 0
    %s14 = scalar_lea.sflag [#allocation3], 1
    %15 = vsyncpa %s14, 0
    %16 = vsyncpa [#allocation5], 0
    %s17 = scalar_lea.sflag [#allocation5], 1
    %18 = vsyncpa %s17, 0
    loop: start=0, step=1, limit=4
    $region2: #{tpu_custom_call.1} parent=1 // loop_pre_header
      _
    $region3: #{tpu_custom_call.1} parent=1 // loop_header
      %s20 = sphi 0, %s24
      %p21 = scmp.ge.s32.totalorder %s20, 4
      %s30 = sphi 0, %s32
      %s33 = sphi 0, %s30
      %s34 = sphi 0, %s33
      %s50 = sphi 0, %s34
      %s56 = sphi 0, %s58
      %s59 = sphi 0, %s56
      %s60 = sphi 0, %s59
      %s76 = sphi 0, %s60
      %s80 = sphi 0, %s80
      %s82 = sphi 0, %s80
      %s83 = sphi 0, %s82
      %s97 = sphi 0, %s83
      %s101 = sphi 0, %s101
      %s103 = sphi 0, %s101
      %s104 = sphi 0, %s103
      %s118 = sphi 0, %s104
      %s122 = sphi 0, %s122
      %s124 = sphi 0, %s122
      %s125 = sphi 0, %s124
      %s139 = sphi 0, %s125
      %s143 = sphi 0, %s143
      %s145 = sphi 0, %s143
      %s146 = sphi 0, %s145
      %s160 = sphi 0, %s146
      %s166 = sphi 0, %s168
      %s169 = sphi 0, %s166
      %s170 = sphi 0, %s169
      %s186 = sphi 0, %s170
      %s192 = sphi 0, %s194
      %s195 = sphi 0, %s192
      %s196 = sphi 0, %s195
      %s212 = sphi 0, %s196
    $region4: #{tpu_custom_call.1} parent=1 // loop_header_branch
      %23 = sbr.rel (%p21) target = $region8
    $region5: #{tpu_custom_call.1} parent=1 // loop_body
      %s25 = ssub.s32 %s20, 1
      %s26 = ssub.s32 %s20, 2
      %s27 = sadd.s32 %s20, 1
      %s28 = ssub.s32 %s20, %s27
      %p29 = scmp.eq.s32.totalorder %s28, 0
      %s31 = sadd.s32 %s30, 1
      %s32 = scalar_select %p29, %s30, %s31
      %p35 = pneg %p29
      %p36 = scmp.eq.s32.totalorder %s20, 1
      %p37 = por %p35, %p36
      %p38 = scmp.ne.s32.totalorder %s30, %s33
      %p39 = scmp.eq.s32.totalorder %s20, 0
      %p40 = por %p38, %p39
      %p41 = scmp.ne.s32.totalorder %s30, %s33
      %p42 = scmp.eq.s32.totalorder %s25, 1
      %p43 = por %p41, %p42
      %p44 = scmp.ne.s32.totalorder %s33, %s34
      %p45 = scmp.eq.s32.totalorder %s25, 0
      %p46 = por %p44, %p45
      %p47 = scmp.ne.s32.totalorder %s33, %s34
      %p48 = scmp.eq.s32.totalorder %s26, 1
      %p49 = por %p47, %p48
      %p51 = scmp.ne.s32.totalorder %s34, %s50
      %p52 = scmp.eq.s32.totalorder %s26, 0
      %p53 = por %p51, %p52
      %s54 = ssub.s32 %s20, %s27
      %p55 = scmp.eq.s32.totalorder %s54, 0
      %s57 = sadd.s32 %s56, 1
      %s58 = scalar_select %p55, %s56, %s57
      %p61 = pneg %p55
      %p62 = scmp.eq.s32.totalorder %s20, 1
      %p63 = por %p61, %p62
      %p64 = scmp.ne.s32.totalorder %s56, %s59
      %p65 = scmp.eq.s32.totalorder %s20, 0
      %p66 = por %p64, %p65
      %p67 = scmp.ne.s32.totalorder %s56, %s59
      %p68 = scmp.eq.s32.totalorder %s25, 1
      %p69 = por %p67, %p68
      %p70 = scmp.ne.s32.totalorder %s59, %s60
      %p71 = scmp.eq.s32.totalorder %s25, 0
      %p72 = por %p70, %p71
      %p73 = scmp.ne.s32.totalorder %s59, %s60
      %p74 = scmp.eq.s32.totalorder %s26, 1
      %p75 = por %p73, %p74
      %p77 = scmp.ne.s32.totalorder %s60, %s76
      %p78 = scmp.eq.s32.totalorder %s26, 0
      %p79 = por %p77, %p78
      %s81 = sadd.s32 %s80, 1
      %p84 = scmp.eq.s32.totalorder %s20, 1
      %p85 = scmp.ne.s32.totalorder %s80, %s82
      %p86 = scmp.eq.s32.totalorder %s20, 0
      %p87 = por %p85, %p86
      %p88 = scmp.ne.s32.totalorder %s80, %s82
      %p89 = scmp.eq.s32.totalorder %s25, 1
      %p90 = por %p88, %p89
      %p91 = scmp.ne.s32.totalorder %s82, %s83
      %p92 = scmp.eq.s32.totalorder %s25, 0
      %p93 = por %p91, %p92
      %p94 = scmp.ne.s32.totalorder %s82, %s83
      %p95 = scmp.eq.s32.totalorder %s26, 1
      %p96 = por %p94, %p95
      %p98 = scmp.ne.s32.totalorder %s83, %s97
      %p99 = scmp.eq.s32.totalorder %s26, 0
      %p100 = por %p98, %p99
      %s102 = sadd.s32 %s101, 1
      %p105 = scmp.eq.s32.totalorder %s20, 1
      %p106 = scmp.ne.s32.totalorder %s101, %s103
      %p107 = scmp.eq.s32.totalorder %s20, 0
      %p108 = por %p106, %p107
      %p109 = scmp.ne.s32.totalorder %s101, %s103
      %p110 = scmp.eq.s32.totalorder %s25, 1
      %p111 = por %p109, %p110
      %p112 = scmp.ne.s32.totalorder %s103, %s104
      %p113 = scmp.eq.s32.totalorder %s25, 0
      %p114 = por %p112, %p113
      %p115 = scmp.ne.s32.totalorder %s103, %s104
      %p116 = scmp.eq.s32.totalorder %s26, 1
      %p117 = por %p115, %p116
      %p119 = scmp.ne.s32.totalorder %s104, %s118
      %p120 = scmp.eq.s32.totalorder %s26, 0
      %p121 = por %p119, %p120
      %s123 = sadd.s32 %s122, 1
      %p126 = scmp.eq.s32.totalorder %s20, 1
      %p127 = scmp.ne.s32.totalorder %s122, %s124
      %p128 = scmp.eq.s32.totalorder %s20, 0
      %p129 = por %p127, %p128
      %p130 = scmp.ne.s32.totalorder %s122, %s124
      %p131 = scmp.eq.s32.totalorder %s25, 1
      %p132 = por %p130, %p131
      %p133 = scmp.ne.s32.totalorder %s124, %s125
      %p134 = scmp.eq.s32.totalorder %s25, 0
      %p135 = por %p133, %p134
      %p136 = scmp.ne.s32.totalorder %s124, %s125
      %p137 = scmp.eq.s32.totalorder %s26, 1
      %p138 = por %p136, %p137
      %p140 = scmp.ne.s32.totalorder %s125, %s139
      %p141 = scmp.eq.s32.totalorder %s26, 0
      %p142 = por %p140, %p141
      %s144 = sadd.s32 %s143, 1
      %p147 = scmp.eq.s32.totalorder %s20, 1
      %p148 = scmp.ne.s32.totalorder %s143, %s145
      %p149 = scmp.eq.s32.totalorder %s20, 0
      %p150 = por %p148, %p149
      %p151 = scmp.ne.s32.totalorder %s143, %s145
      %p152 = scmp.eq.s32.totalorder %s25, 1
      %p153 = por %p151, %p152
      %p154 = scmp.ne.s32.totalorder %s145, %s146
      %p155 = scmp.eq.s32.totalorder %s25, 0
      %p156 = por %p154, %p155
      %p157 = scmp.ne.s32.totalorder %s145, %s146
      %p158 = scmp.eq.s32.totalorder %s26, 1
      %p159 = por %p157, %p158
      %p161 = scmp.ne.s32.totalorder %s146, %s160
      %p162 = scmp.eq.s32.totalorder %s26, 0
      %p163 = por %p161, %p162
      %s164 = ssub.s32 %s20, %s27
      %p165 = scmp.eq.s32.totalorder %s164, 0
      %s167 = sadd.s32 %s166, 1
      %s168 = scalar_select %p165, %s166, %s167
      %p171 = pneg %p165
      %p172 = scmp.eq.s32.totalorder %s20, 1
      %p173 = por %p171, %p172
      %p174 = scmp.ne.s32.totalorder %s166, %s169
      %p175 = scmp.eq.s32.totalorder %s20, 0
      %p176 = por %p174, %p175
      %p177 = scmp.ne.s32.totalorder %s166, %s169
      %p178 = scmp.eq.s32.totalorder %s25, 1
      %p179 = por %p177, %p178
      %p180 = scmp.ne.s32.totalorder %s169, %s170
      %p181 = scmp.eq.s32.totalorder %s25, 0
      %p182 = por %p180, %p181
      %p183 = scmp.ne.s32.totalorder %s169, %s170
      %p184 = scmp.eq.s32.totalorder %s26, 1
      %p185 = por %p183, %p184
      %p187 = scmp.ne.s32.totalorder %s170, %s186
      %p188 = scmp.eq.s32.totalorder %s26, 0
      %p189 = por %p187, %p188
      %s190 = ssub.s32 %s20, %s27
      %p191 = scmp.eq.s32.totalorder %s190, 0
      %s193 = sadd.s32 %s192, 1
      %s194 = scalar_select %p191, %s192, %s193
      %p197 = pneg %p191
      %p198 = scmp.eq.s32.totalorder %s20, 1
      %p199 = por %p197, %p198
      %p200 = scmp.ne.s32.totalorder %s192, %s195
      %p201 = scmp.eq.s32.totalorder %s20, 0
      %p202 = por %p200, %p201
      %p203 = scmp.ne.s32.totalorder %s192, %s195
      %p204 = scmp.eq.s32.totalorder %s25, 1
      %p205 = por %p203, %p204
      %p206 = scmp.ne.s32.totalorder %s195, %s196
      %p207 = scmp.eq.s32.totalorder %s25, 0
      %p208 = por %p206, %p207
      %p209 = scmp.ne.s32.totalorder %s195, %s196
      %p210 = scmp.eq.s32.totalorder %s26, 1
      %p211 = por %p209, %p210
      %p213 = scmp.ne.s32.totalorder %s196, %s212
      %p214 = scmp.eq.s32.totalorder %s26, 0
      %p215 = por %p213, %p214
      %p216 = scmp.le.s32.totalorder 1, %s20
      %p217 = scmp.lt.s32.totalorder %s20, 3
      %p218 = pnand %p216, %p217
      %p219 = pneg %p218
      // Predicated region
      $region9: #{tpu_custom_call.1} parent=5 // pred_check
        _
      $region10: #{tpu_custom_call.1} parent=5 // pred_check_branch
        %221 = sbr.rel (%p218) target = $region12
      $region11: #{tpu_custom_call.1} parent=5 // pred_region
        %s222 = ssub.s32 %s20, 1
        // Predicated region
        $region13: #{tpu_custom_call.1} parent=11 // pred_check
          %p223 = pneg %p93
        $region14: #{tpu_custom_call.1} parent=11 // pred_check_branch
          %225 = sbr.rel (%p223) target = $region16
        $region15: #{tpu_custom_call.1} parent=11 // pred_region
          _
        $region16: #{tpu_custom_call.1} parent=11 // pred_fallthru
          _
        // Predicated region
        $region17: #{tpu_custom_call.1} parent=11 // pred_check
          %p226 = pneg %p114
        $region18: #{tpu_custom_call.1} parent=11 // pred_check_branch
          %228 = sbr.rel (%p226) target = $region20
        $region19: #{tpu_custom_call.1} parent=11 // pred_region
          _
        $region20: #{tpu_custom_call.1} parent=11 // pred_fallthru
          _
        // Predicated region
        $region21: #{tpu_custom_call.1} parent=11 // pred_check
          %p229 = pneg %p135
        $region22: #{tpu_custom_call.1} parent=11 // pred_check_branch
          %231 = sbr.rel (%p229) target = $region24
        $region23: #{tpu_custom_call.1} parent=11 // pred_region
          _
        $region24: #{tpu_custom_call.1} parent=11 // pred_fallthru
          _
        // Predicated region
        $region25: #{tpu_custom_call.1} parent=11 // pred_check
          %p232 = pneg %p156
        $region26: #{tpu_custom_call.1} parent=11 // pred_check_branch
          %234 = sbr.rel (%p232) target = $region28
        $region27: #{tpu_custom_call.1} parent=11 // pred_region
          _
        $region28: #{tpu_custom_call.1} parent=11 // pred_fallthru
          _
      $region12: #{tpu_custom_call.1} parent=5 // pred_fallthru
        _
      %p235 = scmp.lt.s32.totalorder %s20, 2
      // Predicated region
      $region29: #{tpu_custom_call.1} parent=5 // pred_check
        %p236 = pneg %p235
      $region30: #{tpu_custom_call.1} parent=5 // pred_check_branch
        %238 = sbr.rel (%p236) target = $region32
      $region31: #{tpu_custom_call.1} parent=5 // pred_region
        // Predicated region
        $region33: #{tpu_custom_call.1} parent=31 // pred_check
          %p239 = pneg %p40
        $region34: #{tpu_custom_call.1} parent=31 // pred_check_branch
          %241 = sbr.rel (%p239) target = $region36
        $region35: #{tpu_custom_call.1} parent=31 // pred_region
          %p242 = scmp.lt.s32.totalorder %s20, 1
          %s243 = scalar_select %p242, %s20, 1
          %s244 = smul.addr %s243, 8
          %s245 = scalar_lea.vmem %s0, %s244
        $region36: #{tpu_custom_call.1} parent=31 // pred_fallthru
          _
        // Predicated region
        $region37: #{tpu_custom_call.1} parent=31 // pred_check
          %p246 = pneg %p66
        $region38: #{tpu_custom_call.1} parent=31 // pred_check_branch
          %248 = sbr.rel (%p246) target = $region40
        $region39: #{tpu_custom_call.1} parent=31 // pred_region
          %p249 = scmp.lt.s32.totalorder %s20, 1
          %s250 = scalar_select %p249, %s20, 1
          %s251 = smul.addr %s250, 8
          %s252 = scalar_lea.vmem %s1, %s251
        $region40: #{tpu_custom_call.1} parent=31 // pred_fallthru
          _
      $region32: #{tpu_custom_call.1} parent=5 // pred_fallthru
        _
      %p253 = scmp.le.s32.totalorder 1, %s20
      %p254 = scmp.lt.s32.totalorder %s20, 3
      %p255 = pnand %p253, %p254
      %p256 = pneg %p255
      // Predicated region
      $region41: #{tpu_custom_call.1} parent=5 // pred_check
        _
      $region42: #{tpu_custom_call.1} parent=5 // pred_check_branch
        %258 = sbr.rel (%p255) target = $region44
      $region43: #{tpu_custom_call.1} parent=5 // pred_region
        %s259 = ssub.s32 %s20, 1
        %p260 = scmp.lt.s32.totalorder %s25, 1
        %s261 = scalar_select %p260, %s25, 1
        %s262 = smul.addr %s261, 8
        %s263 = scalar_lea.vmem %s0, %s262
        %p264 = pneg %p46
        %p265 = pneg %p43
        %p266 = scmp.lt.s32.totalorder %s25, 1
        %s267 = scalar_select %p266, %s25, 1
        %s268 = smul.addr %s267, 8
        %s269 = scalar_lea.vmem %s1, %s268
        %p270 = pneg %p72
        %p271 = pneg %p69
        %p272 = pneg %p93
        %p273 = pneg %p90
        %p274 = pneg %p114
        %p275 = pneg %p111
        %p276 = pneg %p135
        %p277 = pneg %p132
        %p278 = pneg %p156
        %p279 = pneg %p153
        %p280 = pneg %p182
        %p281 = pneg %p179
        %s282 = sand.u32 %s169, 1
        %s283 = scalar_lea.sflag [#allocation3], %s282
        %s284 = sand.u32 %s169, 1
        %s285 = smul.addr %s284, 8
        %s286 = scalar_lea.vmem [#allocation2], %s285
        %p287 = pneg %p208
        %p288 = pneg %p205
        %s289 = sand.u32 %s195, 1
        %s290 = scalar_lea.sflag [#allocation5], %s289
        %s291 = sand.u32 %s195, 1
        %s292 = smul.addr %s291, 8
        %s293 = scalar_lea.vmem [#allocation4], %s292
        %p294 = scmp.lt.s32.totalorder %s25, 1
        %s295 = scalar_select %p294, %s25, 1
        %s296 = smul.addr %s295, 8
        %s297 = scalar_lea.vmem %s0, %s296
        %p298 = scmp.lt.s32.totalorder %s25, 1
        %s299 = scalar_select %p298, %s25, 1
        %s300 = smul.addr %s299, 8
        %s301 = scalar_lea.vmem %s1, %s300
        %v302 = vld [vmem:[%s297] sm:$0xff]
        %v303 = vld [vmem:[%s2] sm:$0xff]
        %v304 = vld [vmem:[%s2 + $0x8] sm:$0xff]
        %v305 = vld [vmem:[%s2 + $0x10] sm:$0xff]
        %v306 = vld [vmem:[%s2 + $0x18] sm:$0xff]
        %v307 = vld [vmem:[%s3] sm:$0x1]
        %v309 = vlaneseq
        %v310 = vshrl.u32 %v309, 7
        %v311 = vsub.s32 0, %v310
        %v312 = vrot.slane %v307, %v311
        %vm314 = vcmask 261120
        %v316 = vsel %vm314, %v302, 0
        %318 = vmatprep.subr.mxu0 0.0
        %319 = vmatpush1.msra.mxu0 0.0
        %320 = vmatprep.subr.mxu0 0.0
        %321 = vmatpush1.msra.mxu0 0.0
        %322 = vmatprep.subr.mxu0 0.0
        %323 = vmatpush1.msra.mxu0 0.0
        %324 = vmatprep.subr.mxu0 0.0
        %325 = vmatpush1.msra.mxu0 0.0
        %326 = vmatprep.subr.mxu0 0.0
        %327 = vmatpush1.msra.mxu0 0.0
        %328 = vmatprep.subr.mxu0 0.0
        %329 = vmatpush1.msra.mxu0 0.0
        %330 = vmatprep.subr.mxu0 0.0
        %331 = vmatpush1.msra.mxu0 0.0
        %332 = vmatprep.subr.mxu0 0.0
        %333 = vmatpush1.msra.mxu0 0.0
        %334 = vmatprep.subr.mxu0 0.0
        %335 = vmatpush1.msra.mxu0 0.0
        %336 = vmatprep.subr.mxu0 0.0
        %337 = vmatpush1.msra.mxu0 0.0
        %338 = vmatprep.subr.mxu0 0.0
        %339 = vmatpush1.msra.mxu0 0.0
        %340 = vmatprep.subr.mxu0 0.0
        %341 = vmatpush1.msra.mxu0 0.0
        %342 = vmatprep.subr.mxu0 0.0
        %343 = vmatpush1.msra.mxu0 %v306
        %344 = vmatprep.subr.mxu0 0.0
        %345 = vmatpush1.msra.mxu0 %v305
        %346 = vmatprep.subr.mxu0 0.0
        %347 = vmatpush1.msra.mxu0 %v304
        %348 = vmatprep.subr.mxu0 0.0
        %349 = vmatpush1.msra.mxu0 %v303
        %350 = vmatprep.subr.mxu0 0.0
        %351 = vmatpush2.msra.mxu0 0.0
        %352 = vmatprep.subr.mxu0 0.0
        %353 = vmatpush2.msra.mxu0 0.0
        %354 = vmatprep.subr.mxu0 0.0
        %355 = vmatpush2.msra.mxu0 0.0
        %356 = vmatprep.subr.mxu0 0.0
        %357 = vmatpush2.msra.mxu0 0.0
        %358 = vmatprep.subr.mxu0 0.0
        %359 = vmatpush2.msra.mxu0 0.0
        %360 = vmatprep.subr.mxu0 0.0
        %361 = vmatpush2.msra.mxu0 0.0
        %362 = vmatprep.subr.mxu0 0.0
        %363 = vmatpush2.msra.mxu0 0.0
        %364 = vmatprep.subr.mxu0 0.0
        %365 = vmatpush2.msra.mxu0 0.0
        %366 = vmatprep.subr.mxu0 0.0
        %367 = vmatpush2.msra.mxu0 0.0
        %368 = vmatprep.subr.mxu0 0.0
        %369 = vmatpush2.msra.mxu0 0.0
        %370 = vmatprep.subr.mxu0 0.0
        %371 = vmatpush2.msra.mxu0 0.0
        %372 = vmatprep.subr.mxu0 0.0
        %373 = vmatpush2.msra.mxu0 0.0
        %374 = vmatprep.subr.mxu0 0.0
        %375 = vmatpush2.msra.mxu0 0.0
        %376 = vmatprep.subr.mxu0 0.0
        %377 = vmatpush2.msra.mxu0 0.0
        %378 = vmatprep.subr.mxu0 0.0
        %379 = vmatpush2.msra.mxu0 0.0
        %380 = vmatprep.subr.mxu0 0.0
        %381 = vmatpush2.msra.mxu0 0.0
        %382 = vmatprep.mubr.f32.mxu0 0.0
        %383 = vmatmul.mubr.f32.gmra.mxu0 %v316
        %v384 = vpop.f32.mrf.mxu0
        %v385 = vadd.f32 %v312, %v384
        %v386 = vpop.f32.mrf.mxu0
        %387 = vdwg.mxu0
        %vm388 = vcmask 130048
        %389 = vst.msk [vmem:[%s286] sm:$0xff] %vm388, %v385
        %v390 = vld [vmem:[%s301] sm:$0xff]
        %v391 = vld [vmem:[%s4] sm:$0xff]
        %v392 = vld [vmem:[%s4 + $0x8] sm:$0xff]
        %v393 = vld [vmem:[%s4 + $0x10] sm:$0xff]
        %v394 = vld [vmem:[%s4 + $0x18] sm:$0xff]
        %v395 = vld [vmem:[%s5] sm:$0x1]
        %v397 = vlaneseq
        %v398 = vshrl.u32 %v397, 7
        %v399 = vsub.s32 0, %v398
        %v400 = vrot.slane %v395, %v399
        %v403 = vsel %vm314, %v390, 0
        %405 = vmatprep.subr.mxu0 0.0
        %406 = vmatpush1.msra.mxu0 0.0
        %407 = vmatprep.subr.mxu0 0.0
        %408 = vmatpush1.msra.mxu0 0.0
        %409 = vmatprep.subr.mxu0 0.0
        %410 = vmatpush1.msra.mxu0 0.0
        %411 = vmatprep.subr.mxu0 0.0
        %412 = vmatpush1.msra.mxu0 0.0
        %413 = vmatprep.subr.mxu0 0.0
        %414 = vmatpush1.msra.mxu0 0.0
        %415 = vmatprep.subr.mxu0 0.0
        %416 = vmatpush1.msra.mxu0 0.0
        %417 = vmatprep.subr.mxu0 0.0
        %418 = vmatpush1.msra.mxu0 0.0
        %419 = vmatprep.subr.mxu0 0.0
        %420 = vmatpush1.msra.mxu0 0.0
        %421 = vmatprep.subr.mxu0 0.0
        %422 = vmatpush1.msra.mxu0 0.0
        %423 = vmatprep.subr.mxu0 0.0
        %424 = vmatpush1.msra.mxu0 0.0
        %425 = vmatprep.subr.mxu0 0.0
        %426 = vmatpush1.msra.mxu0 0.0
        %427 = vmatprep.subr.mxu0 0.0
        %428 = vmatpush1.msra.mxu0 0.0
        %429 = vmatprep.subr.mxu0 0.0
        %430 = vmatpush1.msra.mxu0 %v394
        %431 = vmatprep.subr.mxu0 0.0
        %432 = vmatpush1.msra.mxu0 %v393
        %433 = vmatprep.subr.mxu0 0.0
        %434 = vmatpush1.msra.mxu0 %v392
        %435 = vmatprep.subr.mxu0 0.0
        %436 = vmatpush1.msra.mxu0 %v391
        %437 = vmatprep.subr.mxu0 0.0
        %438 = vmatpush2.msra.mxu0 0.0
        %439 = vmatprep.subr.mxu0 0.0
        %440 = vmatpush2.msra.mxu0 0.0
        %441 = vmatprep.subr.mxu0 0.0
        %442 = vmatpush2.msra.mxu0 0.0
        %443 = vmatprep.subr.mxu0 0.0
        %444 = vmatpush2.msra.mxu0 0.0
        %445 = vmatprep.subr.mxu0 0.0
        %446 = vmatpush2.msra.mxu0 0.0
        %447 = vmatprep.subr.mxu0 0.0
        %448 = vmatpush2.msra.mxu0 0.0
        %449 = vmatprep.subr.mxu0 0.0
        %450 = vmatpush2.msra.mxu0 0.0
        %451 = vmatprep.subr.mxu0 0.0
        %452 = vmatpush2.msra.mxu0 0.0
        %453 = vmatprep.subr.mxu0 0.0
        %454 = vmatpush2.msra.mxu0 0.0
        %455 = vmatprep.subr.mxu0 0.0
        %456 = vmatpush2.msra.mxu0 0.0
        %457 = vmatprep.subr.mxu0 0.0
        %458 = vmatpush2.msra.mxu0 0.0
        %459 = vmatprep.subr.mxu0 0.0
        %460 = vmatpush2.msra.mxu0 0.0
        %461 = vmatprep.subr.mxu0 0.0
        %462 = vmatpush2.msra.mxu0 0.0
        %463 = vmatprep.subr.mxu0 0.0
        %464 = vmatpush2.msra.mxu0 0.0
        %465 = vmatprep.subr.mxu0 0.0
        %466 = vmatpush2.msra.mxu0 0.0
        %467 = vmatprep.subr.mxu0 0.0
        %468 = vmatpush2.msra.mxu0 0.0
        %469 = vmatprep.mubr.f32.mxu0 0.0
        %470 = vmatmul.mubr.f32.gmra.mxu0 %v403
        %v471 = vpop.f32.mrf.mxu0
        %v472 = vadd.f32 %v400, %v471
        %v473 = vpop.f32.mrf.mxu0
        %474 = vdwg.mxu0
        %475 = vst.msk [vmem:[%s293] sm:$0xff] %vm388, %v472
        %s476 = sand.u32 %s169, 1
        %s477 = scalar_lea.sflag [#allocation3], %s476
        %s478 = sand.u32 %s169, 1
        %s479 = smul.addr %s478, 8
        %s480 = scalar_lea.vmem [#allocation2], %s479
        %s481 = sand.u32 %s195, 1
        %s482 = scalar_lea.sflag [#allocation5], %s481
        %s483 = sand.u32 %s195, 1
        %s484 = smul.addr %s483, 8
        %s485 = scalar_lea.vmem [#allocation4], %s484
        // Predicated region
        $region45: #{tpu_custom_call.1} parent=43 // pred_check
          %p486 = pneg %p179
        $region46: #{tpu_custom_call.1} parent=43 // pred_check_branch
          %488 = sbr.rel (%p486) target = $region48
        $region47: #{tpu_custom_call.1} parent=43 // pred_region
          %s490 = ssub.s32 128, 128
          %491 = vsyncadd %s477, %s490
          %s492 = smul.addr %s25, 128
          %s493 = scalar_lea.hbm %s6, %s492
          %s495 = sshll.u32 %s480, 4
          %s496 = int_to_ptr.vmem [resolvable:$true] %s495
          %498 = dma.vmem_to_hbm [thread:$0]  %s496, 128, %s493, %s477
        $region48: #{tpu_custom_call.1} parent=43 // pred_fallthru
          _
        // Predicated region
        $region49: #{tpu_custom_call.1} parent=43 // pred_check
          %p499 = pneg %p205
        $region50: #{tpu_custom_call.1} parent=43 // pred_check_branch
          %501 = sbr.rel (%p499) target = $region52
        $region51: #{tpu_custom_call.1} parent=43 // pred_region
          %s503 = ssub.s32 128, 128
          %504 = vsyncadd %s482, %s503
          %s505 = smul.addr %s25, 128
          %s506 = scalar_lea.hbm %s7, %s505
          %s508 = sshll.u32 %s485, 4
          %s509 = int_to_ptr.vmem [resolvable:$true] %s508
          %511 = dma.vmem_to_hbm [thread:$0]  %s509, 128, %s506, %s482
        $region52: #{tpu_custom_call.1} parent=43 // pred_fallthru
          _
      $region44: #{tpu_custom_call.1} parent=5 // pred_fallthru
        _
      %p512 = scmp.le.s32.totalorder 2, %s20
      // Predicated region
      $region53: #{tpu_custom_call.1} parent=5 // pred_check
        %p513 = pneg %p512
      $region54: #{tpu_custom_call.1} parent=5 // pred_check_branch
        %515 = sbr.rel (%p513) target = $region56
      $region55: #{tpu_custom_call.1} parent=5 // pred_region
        %s516 = ssub.s32 %s20, 2
        // Predicated region
        $region57: #{tpu_custom_call.1} parent=55 // pred_check
          %p517 = pneg %p185
        $region58: #{tpu_custom_call.1} parent=55 // pred_check_branch
          %519 = sbr.rel (%p517) target = $region60
        $region59: #{tpu_custom_call.1} parent=55 // pred_region
          %s520 = sand.u32 %s170, 1
          %s521 = scalar_lea.sflag [#allocation3], %s520
          %s522 = sand.u32 %s170, 1
          %s523 = smul.addr %s522, 8
          %s524 = scalar_lea.vmem [#allocation2], %s523
          %525 = dma.done %s521, 128
        $region60: #{tpu_custom_call.1} parent=55 // pred_fallthru
          _
        // Predicated region
        $region61: #{tpu_custom_call.1} parent=55 // pred_check
          %p526 = pneg %p211
        $region62: #{tpu_custom_call.1} parent=55 // pred_check_branch
          %528 = sbr.rel (%p526) target = $region64
        $region63: #{tpu_custom_call.1} parent=55 // pred_region
          %s529 = sand.u32 %s196, 1
          %s530 = scalar_lea.sflag [#allocation5], %s529
          %s531 = sand.u32 %s196, 1
          %s532 = smul.addr %s531, 8
          %s533 = scalar_lea.vmem [#allocation4], %s532
          %534 = dma.done %s530, 128
        $region64: #{tpu_custom_call.1} parent=55 // pred_fallthru
          _
      $region56: #{tpu_custom_call.1} parent=5 // pred_fallthru
        _
    $region6: #{tpu_custom_call.1} parent=1 // loop_footer
      %s24 = sadd.s32 1, %s20
    $region7: #{tpu_custom_call.1} parent=1 // loop_footer_branch
      %19 = sbr.rel target = $region3
    $region8: #{tpu_custom_call.1} parent=1 // loop_exit
      _
    %535 = vsyncpa [#allocation3], 1
    %s536 = scalar_lea.sflag [#allocation3], 1
    %537 = vsyncpa %s536, 1
    %538 = vsyncpa [#allocation5], 1
    %s539 = scalar_lea.sflag [#allocation5], 1
    %540 = vsyncpa %s539, 1

// kernel: tpu_custom_call.1
$region0: #{tpu_custom_call.1}
  #allocation0 [shape = 'u32[]', space=smem, size = 0x4, offset = 0x4, fixed_abs, tag = 'smem constant byte address 0x4 - core index']
  #allocation1 [shape = 'u32[144,128]{1,0:T(1,128)}', space=vmem, size = 0x12000, scoped, tag = 'internal scratch']
  %s0 = inlined_call_operand.vmem [shape: f32[16,32], index: 0, kind: input, shape index: {}]
  %s1 = inlined_call_operand.vmem [shape: f32[16,32], index: 1, kind: input, shape index: {}]
  %s2 = inlined_call_operand.vmem [shape: f32[32,16], index: 2, kind: input, shape index: {}]
  %s3 = inlined_call_operand.vmem [shape: f32[1,16], index: 3, kind: input, shape index: {}]
  %s4 = inlined_call_operand.vmem [shape: f32[32,16], index: 4, kind: input, shape index: {}]
  %s5 = inlined_call_operand.vmem [shape: f32[1,16], index: 5, kind: input, shape index: {}]
  %s6 = inlined_call_operand.hbm [shape: f32[16,16], index: 6, kind: output, shape index: {0}]
  %s7 = inlined_call_operand.hbm [shape: f32[16,16], index: 7, kind: output, shape index: {1}]
  %8 = xla_tuple %s6, %s7
  %s9 = sld [smem:[#allocation0]]
  $region65: #{tpu_custom_call.1} parent=0
    _
  %s11 = ssub.s32 1, %s9
  %s12 = scalar_select 0, %s11, %s9
  $region1: #{tpu_custom_call.1} parent=0
    #allocation2 [shape = 'u8[8192]{0}', space=vmem, size = 0x2000, scoped, tag = 'output window, operand 0']
    #allocation3 [shape = 's32[2]{0}', space=sflag, size = 0x8, scoped, tag = 'scoped memory for tpu_custom_call.1']
    #allocation4 [shape = 'u8[8192]{0}', space=vmem, size = 0x2000, scoped, tag = 'output window, operand 1']
    #allocation5 [shape = 's32[2]{0}', space=sflag, size = 0x8, scoped, tag = 'scoped memory for tpu_custom_call.1']
    %13 = vsyncpa [#allocation3], 0
    %s14 = scalar_lea.sflag [#allocation3], 1
    %15 = vsyncpa %s14, 0
    %16 = vsyncpa [#allocation5], 0
    %s17 = scalar_lea.sflag [#allocation5], 1
    %18 = vsyncpa %s17, 0
    loop: start=0, step=1, limit=4
    $region2: #{tpu_custom_call.1} parent=1 // loop_pre_header
      _
    $region3: #{tpu_custom_call.1} parent=1 // loop_header
      %s20 = sphi 0, %s24
      %p21 = scmp.ge.s32.totalorder %s20, 4
      %s30 = sphi 0, %s32
      %s33 = sphi 0, %s30
      %s34 = sphi 0, %s33
      %s50 = sphi 0, %s34
      %s56 = sphi 0, %s58
      %s59 = sphi 0, %s56
      %s60 = sphi 0, %s59
      %s76 = sphi 0, %s60
      %s80 = sphi 0, %s80
      %s82 = sphi 0, %s80
      %s83 = sphi 0, %s82
      %s97 = sphi 0, %s83
      %s101 = sphi 0, %s101
      %s103 = sphi 0, %s101
      %s104 = sphi 0, %s103
      %s118 = sphi 0, %s104
      %s122 = sphi 0, %s122
      %s124 = sphi 0, %s122
      %s125 = sphi 0, %s124
      %s139 = sphi 0, %s125
      %s143 = sphi 0, %s143
      %s145 = sphi 0, %s143
      %s146 = sphi 0, %s145
      %s160 = sphi 0, %s146
      %s166 = sphi 0, %s168
      %s169 = sphi 0, %s166
      %s170 = sphi 0, %s169
      %s186 = sphi 0, %s170
      %s192 = sphi 0, %s194
      %s195 = sphi 0, %s192
      %s196 = sphi 0, %s195
      %s212 = sphi 0, %s196
    $region4: #{tpu_custom_call.1} parent=1 // loop_header_branch
      %23 = sbr.rel (%p21) target = $region8
    $region5: #{tpu_custom_call.1} parent=1 // loop_body
      %s25 = ssub.s32 %s20, 1
      %s26 = ssub.s32 %s20, 2
      %s27 = sadd.s32 %s20, 1
      %s28 = ssub.s32 %s20, %s27
      %p29 = scmp.eq.s32.totalorder %s28, 0
      %s31 = sadd.s32 %s30, 1
      %s32 = scalar_select %p29, %s30, %s31
      %p35 = pneg %p29
      %p36 = scmp.eq.s32.totalorder %s20, 1
      %p37 = por %p35, %p36
      %p38 = scmp.ne.s32.totalorder %s30, %s33
      %p39 = scmp.eq.s32.totalorder %s20, 0
      %p40 = por %p38, %p39
      %p41 = scmp.ne.s32.totalorder %s30, %s33
      %p42 = scmp.eq.s32.totalorder %s25, 1
      %p43 = por %p41, %p42
      %p44 = scmp.ne.s32.totalorder %s33, %s34
      %p45 = scmp.eq.s32.totalorder %s25, 0
      %p46 = por %p44, %p45
      %p47 = scmp.ne.s32.totalorder %s33, %s34
      %p48 = scmp.eq.s32.totalorder %s26, 1
      %p49 = por %p47, %p48
      %p51 = scmp.ne.s32.totalorder %s34, %s50
      %p52 = scmp.eq.s32.totalorder %s26, 0
      %p53 = por %p51, %p52
      %s54 = ssub.s32 %s20, %s27
      %p55 = scmp.eq.s32.totalorder %s54, 0
      %s57 = sadd.s32 %s56, 1
      %s58 = scalar_select %p55, %s56, %s57
      %p61 = pneg %p55
      %p62 = scmp.eq.s32.totalorder %s20, 1
      %p63 = por %p61, %p62
      %p64 = scmp.ne.s32.totalorder %s56, %s59
      %p65 = scmp.eq.s32.totalorder %s20, 0
      %p66 = por %p64, %p65
      %p67 = scmp.ne.s32.totalorder %s56, %s59
      %p68 = scmp.eq.s32.totalorder %s25, 1
      %p69 = por %p67, %p68
      %p70 = scmp.ne.s32.totalorder %s59, %s60
      %p71 = scmp.eq.s32.totalorder %s25, 0
      %p72 = por %p70, %p71
      %p73 = scmp.ne.s32.totalorder %s59, %s60
      %p74 = scmp.eq.s32.totalorder %s26, 1
      %p75 = por %p73, %p74
      %p77 = scmp.ne.s32.totalorder %s60, %s76
      %p78 = scmp.eq.s32.totalorder %s26, 0
      %p79 = por %p77, %p78
      %s81 = sadd.s32 %s80, 1
      %p84 = scmp.eq.s32.totalorder %s20, 1
      %p85 = scmp.ne.s32.totalorder %s80, %s82
      %p86 = scmp.eq.s32.totalorder %s20, 0
      %p87 = por %p85, %p86
      %p88 = scmp.ne.s32.totalorder %s80, %s82
      %p89 = scmp.eq.s32.totalorder %s25, 1
      %p90 = por %p88, %p89
      %p91 = scmp.ne.s32.totalorder %s82, %s83
      %p92 = scmp.eq.s32.totalorder %s25, 0
      %p93 = por %p91, %p92
      %p94 = scmp.ne.s32.totalorder %s82, %s83
      %p95 = scmp.eq.s32.totalorder %s26, 1
      %p96 = por %p94, %p95
      %p98 = scmp.ne.s32.totalorder %s83, %s97
      %p99 = scmp.eq.s32.totalorder %s26, 0
      %p100 = por %p98, %p99
      %s102 = sadd.s32 %s101, 1
      %p105 = scmp.eq.s32.totalorder %s20, 1
      %p106 = scmp.ne.s32.totalorder %s101, %s103
      %p107 = scmp.eq.s32.totalorder %s20, 0
      %p108 = por %p106, %p107
      %p109 = scmp.ne.s32.totalorder %s101, %s103
      %p110 = scmp.eq.s32.totalorder %s25, 1
      %p111 = por %p109, %p110
      %p112 = scmp.ne.s32.totalorder %s103, %s104
      %p113 = scmp.eq.s32.totalorder %s25, 0
      %p114 = por %p112, %p113
      %p115 = scmp.ne.s32.totalorder %s103, %s104
      %p116 = scmp.eq.s32.totalorder %s26, 1
      %p117 = por %p115, %p116
      %p119 = scmp.ne.s32.totalorder %s104, %s118
      %p120 = scmp.eq.s32.totalorder %s26, 0
      %p121 = por %p119, %p120
      %s123 = sadd.s32 %s122, 1
      %p126 = scmp.eq.s32.totalorder %s20, 1
      %p127 = scmp.ne.s32.totalorder %s122, %s124
      %p128 = scmp.eq.s32.totalorder %s20, 0
      %p129 = por %p127, %p128
      %p130 = scmp.ne.s32.totalorder %s122, %s124
      %p131 = scmp.eq.s32.totalorder %s25, 1
      %p132 = por %p130, %p131
      %p133 = scmp.ne.s32.totalorder %s124, %s125
      %p134 = scmp.eq.s32.totalorder %s25, 0
      %p135 = por %p133, %p134
      %p136 = scmp.ne.s32.totalorder %s124, %s125
      %p137 = scmp.eq.s32.totalorder %s26, 1
      %p138 = por %p136, %p137
      %p140 = scmp.ne.s32.totalorder %s125, %s139
      %p141 = scmp.eq.s32.totalorder %s26, 0
      %p142 = por %p140, %p141
      %s144 = sadd.s32 %s143, 1
      %p147 = scmp.eq.s32.totalorder %s20, 1
      %p148 = scmp.ne.s32.totalorder %s143, %s145
      %p149 = scmp.eq.s32.totalorder %s20, 0
      %p150 = por %p148, %p149
      %p151 = scmp.ne.s32.totalorder %s143, %s145
      %p152 = scmp.eq.s32.totalorder %s25, 1
      %p153 = por %p151, %p152
      %p154 = scmp.ne.s32.totalorder %s145, %s146
      %p155 = scmp.eq.s32.totalorder %s25, 0
      %p156 = por %p154, %p155
      %p157 = scmp.ne.s32.totalorder %s145, %s146
      %p158 = scmp.eq.s32.totalorder %s26, 1
      %p159 = por %p157, %p158
      %p161 = scmp.ne.s32.totalorder %s146, %s160
      %p162 = scmp.eq.s32.totalorder %s26, 0
      %p163 = por %p161, %p162
      %s164 = ssub.s32 %s20, %s27
      %p165 = scmp.eq.s32.totalorder %s164, 0
      %s167 = sadd.s32 %s166, 1
      %s168 = scalar_select %p165, %s166, %s167
      %p171 = pneg %p165
      %p172 = scmp.eq.s32.totalorder %s20, 1
      %p173 = por %p171, %p172
      %p174 = scmp.ne.s32.totalorder %s166, %s169
      %p175 = scmp.eq.s32.totalorder %s20, 0
      %p176 = por %p174, %p175
      %p177 = scmp.ne.s32.totalorder %s166, %s169
      %p178 = scmp.eq.s32.totalorder %s25, 1
      %p179 = por %p177, %p178
      %p180 = scmp.ne.s32.totalorder %s169, %s170
      %p181 = scmp.eq.s32.totalorder %s25, 0
      %p182 = por %p180, %p181
      %p183 = scmp.ne.s32.totalorder %s169, %s170
      %p184 = scmp.eq.s32.totalorder %s26, 1
      %p185 = por %p183, %p184
      %p187 = scmp.ne.s32.totalorder %s170, %s186
      %p188 = scmp.eq.s32.totalorder %s26, 0
      %p189 = por %p187, %p188
      %s190 = ssub.s32 %s20, %s27
      %p191 = scmp.eq.s32.totalorder %s190, 0
      %s193 = sadd.s32 %s192, 1
      %s194 = scalar_select %p191, %s192, %s193
      %p197 = pneg %p191
      %p198 = scmp.eq.s32.totalorder %s20, 1
      %p199 = por %p197, %p198
      %p200 = scmp.ne.s32.totalorder %s192, %s195
      %p201 = scmp.eq.s32.totalorder %s20, 0
      %p202 = por %p200, %p201
      %p203 = scmp.ne.s32.totalorder %s192, %s195
      %p204 = scmp.eq.s32.totalorder %s25, 1
      %p205 = por %p203, %p204
      %p206 = scmp.ne.s32.totalorder %s195, %s196
      %p207 = scmp.eq.s32.totalorder %s25, 0
      %p208 = por %p206, %p207
      %p209 = scmp.ne.s32.totalorder %s195, %s196
      %p210 = scmp.eq.s32.totalorder %s26, 1
      %p211 = por %p209, %p210
      %p213 = scmp.ne.s32.totalorder %s196, %s212
      %p214 = scmp.eq.s32.totalorder %s26, 0
      %p215 = por %p213, %p214
      %p216 = scmp.le.s32.totalorder 1, %s20
      %p217 = scmp.lt.s32.totalorder %s20, 3
      %p218 = pnand %p216, %p217
      %p219 = pneg %p218
      // Predicated region
      $region9: #{tpu_custom_call.1} parent=5 // pred_check
        _
      $region10: #{tpu_custom_call.1} parent=5 // pred_check_branch
        %221 = sbr.rel (%p218) target = $region12
      $region11: #{tpu_custom_call.1} parent=5 // pred_region
        %s222 = ssub.s32 %s20, 1
        // Predicated region
        $region13: #{tpu_custom_call.1} parent=11 // pred_check
          %p223 = pneg %p93
        $region14: #{tpu_custom_call.1} parent=11 // pred_check_branch
          %225 = sbr.rel (%p223) target = $region16
        $region15: #{tpu_custom_call.1} parent=11 // pred_region
          _
        $region16: #{tpu_custom_call.1} parent=11 // pred_fallthru
          _
        // Predicated region
        $region17: #{tpu_custom_call.1} parent=11 // pred_check
          %p226 = pneg %p114
        $region18: #{tpu_custom_call.1} parent=11 // pred_check_branch
          %228 = sbr.rel (%p226) target = $region20
        $region19: #{tpu_custom_call.1} parent=11 // pred_region
          _
        $region20: #{tpu_custom_call.1} parent=11 // pred_fallthru
          _
        // Predicated region
        $region21: #{tpu_custom_call.1} parent=11 // pred_check
          %p229 = pneg %p135
        $region22: #{tpu_custom_call.1} parent=11 // pred_check_branch
          %231 = sbr.rel (%p229) target = $region24
        $region23: #{tpu_custom_call.1} parent=11 // pred_region
          _
        $region24: #{tpu_custom_call.1} parent=11 // pred_fallthru
          _
        // Predicated region
        $region25: #{tpu_custom_call.1} parent=11 // pred_check
          %p232 = pneg %p156
        $region26: #{tpu_custom_call.1} parent=11 // pred_check_branch
          %234 = sbr.rel (%p232) target = $region28
        $region27: #{tpu_custom_call.1} parent=11 // pred_region
          _
        $region28: #{tpu_custom_call.1} parent=11 // pred_fallthru
          _
      $region12: #{tpu_custom_call.1} parent=5 // pred_fallthru
        _
      %p235 = scmp.lt.s32.totalorder %s20, 2
      // Predicated region
      $region29: #{tpu_custom_call.1} parent=5 // pred_check
        %p236 = pneg %p235
      $region30: #{tpu_custom_call.1} parent=5 // pred_check_branch
        %238 = sbr.rel (%p236) target = $region32
      $region31: #{tpu_custom_call.1} parent=5 // pred_region
        // Predicated region
        $region33: #{tpu_custom_call.1} parent=31 // pred_check
          %p239 = pneg %p40
        $region34: #{tpu_custom_call.1} parent=31 // pred_check_branch
          %241 = sbr.rel (%p239) target = $region36
        $region35: #{tpu_custom_call.1} parent=31 // pred_region
          %p242 = scmp.lt.s32.totalorder %s20, 1
          %s243 = scalar_select %p242, %s20, 1
          %s244 = smul.addr %s243, 8
          %s245 = scalar_lea.vmem %s0, %s244
        $region36: #{tpu_custom_call.1} parent=31 // pred_fallthru
          _
        // Predicated region
        $region37: #{tpu_custom_call.1} parent=31 // pred_check
          %p246 = pneg %p66
        $region38: #{tpu_custom_call.1} parent=31 // pred_check_branch
          %248 = sbr.rel (%p246) target = $region40
        $region39: #{tpu_custom_call.1} parent=31 // pred_region
          %p249 = scmp.lt.s32.totalorder %s20, 1
          %s250 = scalar_select %p249, %s20, 1
          %s251 = smul.addr %s250, 8
          %s252 = scalar_lea.vmem %s1, %s251
        $region40: #{tpu_custom_call.1} parent=31 // pred_fallthru
          _
      $region32: #{tpu_custom_call.1} parent=5 // pred_fallthru
        _
      %p253 = scmp.le.s32.totalorder 1, %s20
      %p254 = scmp.lt.s32.totalorder %s20, 3
      %p255 = pnand %p253, %p254
      %p256 = pneg %p255
      // Predicated region
      $region41: #{tpu_custom_call.1} parent=5 // pred_check
        _
      $region42: #{tpu_custom_call.1} parent=5 // pred_check_branch
        %258 = sbr.rel (%p255) target = $region44
      $region43: #{tpu_custom_call.1} parent=5 // pred_region
        %s259 = ssub.s32 %s20, 1
        %p260 = scmp.lt.s32.totalorder %s25, 1
        %s261 = scalar_select %p260, %s25, 1
        %s262 = smul.addr %s261, 8
        %s263 = scalar_lea.vmem %s0, %s262
        %p264 = pneg %p46
        %p265 = pneg %p43
        %p266 = scmp.lt.s32.totalorder %s25, 1
        %s267 = scalar_select %p266, %s25, 1
        %s268 = smul.addr %s267, 8
        %s269 = scalar_lea.vmem %s1, %s268
        %p270 = pneg %p72
        %p271 = pneg %p69
        %p272 = pneg %p93
        %p273 = pneg %p90
        %p274 = pneg %p114
        %p275 = pneg %p111
        %p276 = pneg %p135
        %p277 = pneg %p132
        %p278 = pneg %p156
        %p279 = pneg %p153
        %p280 = pneg %p182
        %p281 = pneg %p179
        %s282 = sand.u32 %s169, 1
        %s283 = scalar_lea.sflag [#allocation3], %s282
        %s284 = sand.u32 %s169, 1
        %s285 = smul.addr %s284, 8
        %s286 = scalar_lea.vmem [#allocation2], %s285
        %p287 = pneg %p208
        %p288 = pneg %p205
        %s289 = sand.u32 %s195, 1
        %s290 = scalar_lea.sflag [#allocation5], %s289
        %s291 = sand.u32 %s195, 1
        %s292 = smul.addr %s291, 8
        %s293 = scalar_lea.vmem [#allocation4], %s292
        %p294 = scmp.lt.s32.totalorder %s25, 1
        %s295 = scalar_select %p294, %s25, 1
        %s296 = smul.addr %s295, 8
        %s297 = scalar_lea.vmem %s0, %s296
        %p298 = scmp.lt.s32.totalorder %s25, 1
        %s299 = scalar_select %p298, %s25, 1
        %s300 = smul.addr %s299, 8
        %s301 = scalar_lea.vmem %s1, %s300
        %v302 = vld [vmem:[%s297] sm:$0xff]
        %v303 = vld [vmem:[%s2] sm:$0xff]
        %v304 = vld [vmem:[%s2 + $0x8] sm:$0xff]
        %v305 = vld [vmem:[%s2 + $0x10] sm:$0xff]
        %v306 = vld [vmem:[%s2 + $0x18] sm:$0xff]
        %v307 = vld [vmem:[%s3] sm:$0x1]
        %v309 = vlaneseq
        %v310 = vshrl.u32 %v309, 7
        %v311 = vsub.s32 0, %v310
        %v312 = vrot.slane %v307, %v311
        %vm314 = vcmask 261120
        %v316 = vsel %vm314, %v302, 0
        %318 = vmatprep.subr.mxu0 0.0
        %319 = vmatpush1.msra.mxu0 0.0
        %320 = vmatprep.subr.mxu0 0.0
        %321 = vmatpush1.msra.mxu0 0.0
        %322 = vmatprep.subr.mxu0 0.0
        %323 = vmatpush1.msra.mxu0 0.0
        %324 = vmatprep.subr.mxu0 0.0
        %325 = vmatpush1.msra.mxu0 0.0
        %326 = vmatprep.subr.mxu0 0.0
        %327 = vmatpush1.msra.mxu0 0.0
        %328 = vmatprep.subr.mxu0 0.0
        %329 = vmatpush1.msra.mxu0 0.0
        %330 = vmatprep.subr.mxu0 0.0
        %331 = vmatpush1.msra.mxu0 0.0
        %332 = vmatprep.subr.mxu0 0.0
        %333 = vmatpush1.msra.mxu0 0.0
        %334 = vmatprep.subr.mxu0 0.0
        %335 = vmatpush1.msra.mxu0 0.0
        %336 = vmatprep.subr.mxu0 0.0
        %337 = vmatpush1.msra.mxu0 0.0
        %338 = vmatprep.subr.mxu0 0.0
        %339 = vmatpush1.msra.mxu0 0.0
        %340 = vmatprep.subr.mxu0 0.0
        %341 = vmatpush1.msra.mxu0 0.0
        %342 = vmatprep.subr.mxu0 0.0
        %343 = vmatpush1.msra.mxu0 %v306
        %344 = vmatprep.subr.mxu0 0.0
        %345 = vmatpush1.msra.mxu0 %v305
        %346 = vmatprep.subr.mxu0 0.0
        %347 = vmatpush1.msra.mxu0 %v304
        %348 = vmatprep.subr.mxu0 0.0
        %349 = vmatpush1.msra.mxu0 %v303
        %350 = vmatprep.subr.mxu0 0.0
        %351 = vmatpush2.msra.mxu0 0.0
        %352 = vmatprep.subr.mxu0 0.0
        %353 = vmatpush2.msra.mxu0 0.0
        %354 = vmatprep.subr.mxu0 0.0
        %355 = vmatpush2.msra.mxu0 0.0
        %356 = vmatprep.subr.mxu0 0.0
        %357 = vmatpush2.msra.mxu0 0.0
        %358 = vmatprep.subr.mxu0 0.0
        %359 = vmatpush2.msra.mxu0 0.0
        %360 = vmatprep.subr.mxu0 0.0
        %361 = vmatpush2.msra.mxu0 0.0
        %362 = vmatprep.subr.mxu0 0.0
        %363 = vmatpush2.msra.mxu0 0.0
        %364 = vmatprep.subr.mxu0 0.0
        %365 = vmatpush2.msra.mxu0 0.0
        %366 = vmatprep.subr.mxu0 0.0
        %367 = vmatpush2.msra.mxu0 0.0
        %368 = vmatprep.subr.mxu0 0.0
        %369 = vmatpush2.msra.mxu0 0.0
        %370 = vmatprep.subr.mxu0 0.0
        %371 = vmatpush2.msra.mxu0 0.0
        %372 = vmatprep.subr.mxu0 0.0
        %373 = vmatpush2.msra.mxu0 0.0
        %374 = vmatprep.subr.mxu0 0.0
        %375 = vmatpush2.msra.mxu0 0.0
        %376 = vmatprep.subr.mxu0 0.0
        %377 = vmatpush2.msra.mxu0 0.0
        %378 = vmatprep.subr.mxu0 0.0
        %379 = vmatpush2.msra.mxu0 0.0
        %380 = vmatprep.subr.mxu0 0.0
        %381 = vmatpush2.msra.mxu0 0.0
        %382 = vmatprep.mubr.f32.mxu0 0.0
        %383 = vmatmul.mubr.f32.gmra.mxu0 %v316
        %v384 = vpop.f32.mrf.mxu0
        %v385 = vadd.f32 %v312, %v384
        %v386 = vpop.f32.mrf.mxu0
        %387 = vdwg.mxu0
        %vm388 = vcmask 130048
        %389 = vst.msk [vmem:[%s286] sm:$0xff] %vm388, %v385
        %v390 = vld [vmem:[%s301] sm:$0xff]
        %v391 = vld [vmem:[%s4] sm:$0xff]
        %v392 = vld [vmem:[%s4 + $0x8] sm:$0xff]
        %v393 = vld [vmem:[%s4 + $0x10] sm:$0xff]
        %v394 = vld [vmem:[%s4 + $0x18] sm:$0xff]
        %v395 = vld [vmem:[%s5] sm:$0x1]
        %v397 = vlaneseq
        %v398 = vshrl.u32 %v397, 7
        %v399 = vsub.s32 0, %v398
        %v400 = vrot.slane %v395, %v399
        %v403 = vsel %vm314, %v390, 0
        %405 = vmatprep.subr.mxu0 0.0
        %406 = vmatpush1.msra.mxu0 0.0
        %407 = vmatprep.subr.mxu0 0.0
        %408 = vmatpush1.msra.mxu0 0.0
        %409 = vmatprep.subr.mxu0 0.0
        %410 = vmatpush1.msra.mxu0 0.0
        %411 = vmatprep.subr.mxu0 0.0
        %412 = vmatpush1.msra.mxu0 0.0
        %413 = vmatprep.subr.mxu0 0.0
        %414 = vmatpush1.msra.mxu0 0.0
        %415 = vmatprep.subr.mxu0 0.0
        %416 = vmatpush1.msra.mxu0 0.0
        %417 = vmatprep.subr.mxu0 0.0
        %418 = vmatpush1.msra.mxu0 0.0
        %419 = vmatprep.subr.mxu0 0.0
        %420 = vmatpush1.msra.mxu0 0.0
        %421 = vmatprep.subr.mxu0 0.0
        %422 = vmatpush1.msra.mxu0 0.0
        %423 = vmatprep.subr.mxu0 0.0
        %424 = vmatpush1.msra.mxu0 0.0
        %425 = vmatprep.subr.mxu0 0.0
        %426 = vmatpush1.msra.mxu0 0.0
        %427 = vmatprep.subr.mxu0 0.0
        %428 = vmatpush1.msra.mxu0 0.0
        %429 = vmatprep.subr.mxu0 0.0
        %430 = vmatpush1.msra.mxu0 %v394
        %431 = vmatprep.subr.mxu0 0.0
        %432 = vmatpush1.msra.mxu0 %v393
        %433 = vmatprep.subr.mxu0 0.0
        %434 = vmatpush1.msra.mxu0 %v392
        %435 = vmatprep.subr.mxu0 0.0
        %436 = vmatpush1.msra.mxu0 %v391
        %437 = vmatprep.subr.mxu0 0.0
        %438 = vmatpush2.msra.mxu0 0.0
        %439 = vmatprep.subr.mxu0 0.0
        %440 = vmatpush2.msra.mxu0 0.0
        %441 = vmatprep.subr.mxu0 0.0
        %442 = vmatpush2.msra.mxu0 0.0
        %443 = vmatprep.subr.mxu0 0.0
        %444 = vmatpush2.msra.mxu0 0.0
        %445 = vmatprep.subr.mxu0 0.0
        %446 = vmatpush2.msra.mxu0 0.0
        %447 = vmatprep.subr.mxu0 0.0
        %448 = vmatpush2.msra.mxu0 0.0
        %449 = vmatprep.subr.mxu0 0.0
        %450 = vmatpush2.msra.mxu0 0.0
        %451 = vmatprep.subr.mxu0 0.0
        %452 = vmatpush2.msra.mxu0 0.0
        %453 = vmatprep.subr.mxu0 0.0
        %454 = vmatpush2.msra.mxu0 0.0
        %455 = vmatprep.subr.mxu0 0.0
        %456 = vmatpush2.msra.mxu0 0.0
        %457 = vmatprep.subr.mxu0 0.0
        %458 = vmatpush2.msra.mxu0 0.0
        %459 = vmatprep.subr.mxu0 0.0
        %460 = vmatpush2.msra.mxu0 0.0
        %461 = vmatprep.subr.mxu0 0.0
        %462 = vmatpush2.msra.mxu0 0.0
        %463 = vmatprep.subr.mxu0 0.0
        %464 = vmatpush2.msra.mxu0 0.0
        %465 = vmatprep.subr.mxu0 0.0
        %466 = vmatpush2.msra.mxu0 0.0
        %467 = vmatprep.subr.mxu0 0.0
        %468 = vmatpush2.msra.mxu0 0.0
        %469 = vmatprep.mubr.f32.mxu0 0.0
        %470 = vmatmul.mubr.f32.gmra.mxu0 %v403
        %v471 = vpop.f32.mrf.mxu0
        %v472 = vadd.f32 %v400, %v471
        %v473 = vpop.f32.mrf.mxu0
        %474 = vdwg.mxu0
        %475 = vst.msk [vmem:[%s293] sm:$0xff] %vm388, %v472
        %s476 = sand.u32 %s169, 1
        %s477 = scalar_lea.sflag [#allocation3], %s476
        %s478 = sand.u32 %s169, 1
        %s479 = smul.addr %s478, 8
        %s480 = scalar_lea.vmem [#allocation2], %s479
        %s481 = sand.u32 %s195, 1
        %s482 = scalar_lea.sflag [#allocation5], %s481
        %s483 = sand.u32 %s195, 1
        %s484 = smul.addr %s483, 8
        %s485 = scalar_lea.vmem [#allocation4], %s484
        // Predicated region
        $region45: #{tpu_custom_call.1} parent=43 // pred_check
          %p486 = pneg %p179
        $region46: #{tpu_custom_call.1} parent=43 // pred_check_branch
          %488 = sbr.rel (%p486) target = $region48
        $region47: #{tpu_custom_call.1} parent=43 // pred_region
          %s490 = ssub.s32 128, 128
          %491 = vsyncadd %s477, %s490
          %s492 = smul.addr %s25, 128
          %s493 = scalar_lea.hbm %s6, %s492
          %s495 = sshll.u32 %s480, 4
          %s496 = int_to_ptr.vmem [resolvable:$true] %s495
          %498 = dma.vmem_to_hbm [thread:$0]  %s496, 128, %s493, %s477
        $region48: #{tpu_custom_call.1} parent=43 // pred_fallthru
          _
        // Predicated region
        $region49: #{tpu_custom_call.1} parent=43 // pred_check
          %p499 = pneg %p205
        $region50: #{tpu_custom_call.1} parent=43 // pred_check_branch
          %501 = sbr.rel (%p499) target = $region52
        $region51: #{tpu_custom_call.1} parent=43 // pred_region
          %s503 = ssub.s32 128, 128
          %504 = vsyncadd %s482, %s503
          %s505 = smul.addr %s25, 128
          %s506 = scalar_lea.hbm %s7, %s505
          %s508 = sshll.u32 %s485, 4
          %s509 = int_to_ptr.vmem [resolvable:$true] %s508
          %511 = dma.vmem_to_hbm [thread:$0]  %s509, 128, %s506, %s482
        $region52: #{tpu_custom_call.1} parent=43 // pred_fallthru
          _
      $region44: #{tpu_custom_call.1} parent=5 // pred_fallthru
        _
      %p512 = scmp.le.s32.totalorder 2, %s20
      // Predicated region
      $region53: #{tpu_custom_call.1} parent=5 // pred_check
        %p513 = pneg %p512
      $region54: #{tpu_custom_call.1} parent=5 // pred_check_branch
        %515 = sbr.rel (%p513) target = $region56
      $region55: #{tpu_custom_call.1} parent=5 // pred_region
        %s516 = ssub.s32 %s20, 2
        // Predicated region
        $region57: #{tpu_custom_call.1} parent=55 // pred_check
          %p517 = pneg %p185
        $region58: #{tpu_custom_call.1} parent=55 // pred_check_branch
          %519 = sbr.rel (%p517) target = $region60
        $region59: #{tpu_custom_call.1} parent=55 // pred_region
          %s520 = sand.u32 %s170, 1
          %s521 = scalar_lea.sflag [#allocation3], %s520
          %s522 = sand.u32 %s170, 1
          %s523 = smul.addr %s522, 8
          %s524 = scalar_lea.vmem [#allocation2], %s523
          %525 = dma.done %s521, 128
        $region60: #{tpu_custom_call.1} parent=55 // pred_fallthru
          _
        // Predicated region
        $region61: #{tpu_custom_call.1} parent=55 // pred_check
          %p526 = pneg %p211
        $region62: #{tpu_custom_call.1} parent=55 // pred_check_branch
          %528 = sbr.rel (%p526) target = $region64
        $region63: #{tpu_custom_call.1} parent=55 // pred_region
          %s529 = sand.u32 %s196, 1
          %s530 = scalar_lea.sflag [#allocation5], %s529
          %s531 = sand.u32 %s196, 1
          %s532 = smul.addr %s531, 8
          %s533 = scalar_lea.vmem [#allocation4], %s532
          %534 = dma.done %s530, 128
        $region64: #{tpu_custom_call.1} parent=55 // pred_fallthru
          _
      $region56: #{tpu_custom_call.1} parent=5 // pred_fallthru
        _
    $region6: #{tpu_custom_call.1} parent=1 // loop_footer
      %s24 = sadd.s32 1, %s20
    $region7: #{tpu_custom_call.1} parent=1 // loop_footer_branch
      %19 = sbr.rel target = $region3
    $region8: #{tpu_custom_call.1} parent=1 // loop_exit
      _
    %535 = vsyncpa [#allocation3], 1
    %s536 = scalar_lea.sflag [#allocation3], 1
    %537 = vsyncpa %s536, 1
    %538 = vsyncpa [#allocation5], 1
    %s539 = scalar_lea.sflag [#allocation5], 1
    %540 = vsyncpa %s539, 1

</llo_original>
